<compile_context>
chip_gen: v7x
topology: tpu7x:2x2x1
jax: 0.10.0
libtpu: 0.0.40
codegen_flags: <defaults>
</compile_context>

<pallas_src>
import functools

import jax
import jax.numpy as jnp
from jax import lax
from jax.experimental import pallas as pl
from jax.experimental.pallas import tpu as pltpu

_LANES = 128


def _hash_u32(x):
    """'lowbias32' integer hash: good avalanche, only VPU xor/shift/mul ops."""
    x = x ^ (x >> jnp.uint32(16))
    x = x * jnp.uint32(0x7FEB352D)
    x = x ^ (x >> jnp.uint32(15))
    x = x * jnp.uint32(0x846CA68B)
    x = x ^ (x >> jnp.uint32(16))
    return x


def _u24_to_unit_f32(bits):
    """Top 24 bits of a u32 -> f32 uniform in [0, 1)."""
    u24 = (bits >> jnp.uint32(8)).astype(jnp.int32)          # < 2**24, exact in f32
    return u24.astype(jnp.float32) * jnp.float32(1.0 / (1 << 24))


def _random_kernel(seed_ref, x_ref, o_ref, *, p, a, b):
    tr, lanes = x_ref.shape

    # Stateless counter-based PRNG keyed on (seed, global element index).
    row0 = (pl.program_id(0) * tr).astype(jnp.uint32)
    row = lax.broadcasted_iota(jnp.int32, (tr, lanes), 0).astype(jnp.uint32)
    lane = lax.broadcasted_iota(jnp.int32, (tr, lanes), 1).astype(jnp.uint32)
    seed = seed_ref[0].astype(jnp.uint32)

    ctr = (row0 + row) * jnp.uint32(lanes) + lane + seed * jnp.uint32(0x9E3779B9)
    bits1 = _hash_u32(ctr)                                    # stream for the Bernoulli test
    bits2 = _hash_u32(bits1 + jnp.uint32(0x85EBCA6B))         # chained stream for the value

    r1 = _u24_to_unit_f32(bits1)                                          # U[0,1)
    r2 = _u24_to_unit_f32(bits2) * jnp.float32(b - a) + jnp.float32(a)    # U[a,b)

    x = x_ref[...]
    # Select instead of X*(1-I)+I*r2: fewer VALU ops, keeps low-precision inputs
    # in their native dtype.  (Differs from torch only for NaN/Inf inputs at
    # replaced positions.)
    o_ref[...] = jnp.where(r1 < jnp.float32(p), r2.astype(o_ref.dtype), x)


def random_forward(x, *, p, a, b, seed=0, training=True, max_block_rows=2048):
    """Forward pass of `Random(p, a, b)` on an NCHW (or any-shape) input."""
    if not training:
        return x

    orig_shape = x.shape
    dtype = x.dtype
    n = x.size

    # Flatten to a lane-dense (rows, 128) slab.  Pad only when n is not
    # 128-aligned; the aligned case costs no extra HBM pass (reshape is free).
    rows = pl.cdiv(n, _LANES)
    n_pad = rows * _LANES - n
    flat = x.reshape(-1)
    if n_pad:
        # TODO(synk): for very large unaligned inputs, handle the <128-element
        # tail with plain jnp instead of a full pad/slice pass.
        flat = jnp.concatenate([flat, jnp.zeros((n_pad,), dtype=dtype)])
    x2 = flat.reshape(rows, _LANES)

    # Row tile: dtype-aligned sublane multiple (8/16/32 for 4/2/1-byte dtypes),
    # capped at max_block_rows.  cdiv grid; Pallas masks the ragged last block.
    sub = {1: 32, 2: 16}.get(jnp.dtype(dtype).itemsize, 8)
    cap = max(sub, (max_block_rows // sub) * sub)
    tr = min(cap, pl.cdiv(rows, sub) * sub)
    grid = (pl.cdiv(rows, tr),)

    seed_arr = jnp.array([seed], dtype=jnp.int32)

    out2 = pl.pallas_call(
        functools.partial(_random_kernel, p=float(p), a=float(a), b=float(b)),
        out_shape=jax.ShapeDtypeStruct((rows, _LANES), dtype),
        grid=grid,
        in_specs=[
            pl.BlockSpec(memory_space=pltpu.MemorySpace.SMEM),   # seed scalar
            pl.BlockSpec((tr, _LANES), lambda i: (i, 0)),        # X tile
        ],
        out_specs=pl.BlockSpec((tr, _LANES), lambda i: (i, 0)),
        compiler_params=pltpu.CompilerParams(
            # Blocks are independent (stateless hash PRNG) -> shard the grid
            # across TensorCores on v7x; harmless no-op on v5e/v6e.
            dimension_semantics=("parallel",)
        ),
    )(seed_arr, x2)

    out = out2.reshape(-1)
    if n_pad:
        out = out[:n]
    return out.reshape(orig_shape)


if __name__ == "__main__":
    key = jax.random.PRNGKey(0)
    # Small NCHW input consistent with an image-style module.
    x = jax.random.normal(key, (2, 4, 16, 16), dtype=jnp.float32)

    p, a, b = 0.3, -1.0, 1.0

    # Training-mode forward (the hot path, inside the Pallas kernel).
    y_train = jax.block_until_ready(
        random_forward(x, p=p, a=a, b=b, seed=42, training=True))

    # Eval-mode forward (identity).
    y_eval = jax.block_until_ready(
        random_forward(x, p=p, a=a, b=b, training=False))

    assert y_train.shape == x.shape and y_train.dtype == x.dtype
    assert bool(jnp.all(y_eval == x))

    # Sanity checks on the stochastic semantics.
    changed = float(jnp.mean((y_train != x).astype(jnp.float32)))
    assert 0.05 < changed < 0.6, f"replacement fraction {changed} implausible for p={p}"
    replaced_vals = jnp.where(y_train != x, y_train, 0.0)
    assert float(jnp.max(replaced_vals)) <= b + 1e-6
    assert float(jnp.min(replaced_vals)) >= a - 1e-6

    print("KERNEL_OK")
</pallas_src>

<mosaic_0001>
module attributes {stable_mosaic.version = 11 : i64} {
  func.func @_random_kernel(%arg0: i32, %arg1: memref<1xi32, #tpu.memory_space<smem>>, %arg2: memref<16x128xf32, #tpu.memory_space<vmem>>, %arg3: memref<16x128xf32, #tpu.memory_space<vmem>>) attributes {dimension_semantics = [#tpu.dimension_semantics<parallel>], iteration_bounds = array<i64: 1>, scalar_prefetch = 0 : i64, scratch_operands = 0 : i64, tpu.core_type = #tpu.core_type<tc>, window_params = [{transform_indices = @transform_0, window_bounds = array<i64: 1>}, {transform_indices = @transform_1, window_bounds = array<i64: 16, 128>}, {transform_indices = @transform_2, window_bounds = array<i64: 16, 128>}]} {
    %c16_i32 = arith.constant 16 : i32
    %0 = arith.muli %arg0, %c16_i32 : i32
    %1 = tpu.iota {dimensions = array<i32: 0>} : vector<16x128xi32>
    %2 = tpu.iota {dimensions = array<i32: 1>} : vector<16x128xi32>
    %c0 = arith.constant 0 : index
    %3 = memref.load %arg1[%c0] : memref<1xi32, #tpu.memory_space<smem>>
    %4 = vector.broadcast %0 : i32 to vector<16x128xi32>
    %5 = arith.addi %4, %1 : vector<16x128xi32>
    %c128_i32 = arith.constant 128 : i32
    %6 = vector.broadcast %c128_i32 : i32 to vector<16x128xi32>
    %7 = arith.muli %5, %6 : vector<16x128xi32>
    %8 = arith.addi %7, %2 : vector<16x128xi32>
    %c-1640531527_i32 = arith.constant -1640531527 : i32
    %9 = arith.muli %3, %c-1640531527_i32 : i32
    %10 = vector.broadcast %9 : i32 to vector<16x128xi32>
    %11 = arith.addi %8, %10 : vector<16x128xi32>
    %c16_i32_0 = arith.constant 16 : i32
    %12 = vector.broadcast %c16_i32_0 : i32 to vector<16x128xi32>
    %13 = arith.shrui %11, %12 : vector<16x128xi32>
    %14 = arith.xori %11, %13 : vector<16x128xi32>
    %c2146121005_i32 = arith.constant 2146121005 : i32
    %15 = vector.broadcast %c2146121005_i32 : i32 to vector<16x128xi32>
    %16 = arith.muli %14, %15 : vector<16x128xi32>
    %c15_i32 = arith.constant 15 : i32
    %17 = vector.broadcast %c15_i32 : i32 to vector<16x128xi32>
    %18 = arith.shrui %16, %17 : vector<16x128xi32>
    %19 = arith.xori %16, %18 : vector<16x128xi32>
    %c-2073254261_i32 = arith.constant -2073254261 : i32
    %20 = vector.broadcast %c-2073254261_i32 : i32 to vector<16x128xi32>
    %21 = arith.muli %19, %20 : vector<16x128xi32>
    %c16_i32_1 = arith.constant 16 : i32
    %22 = vector.broadcast %c16_i32_1 : i32 to vector<16x128xi32>
    %23 = arith.shrui %21, %22 : vector<16x128xi32>
    %24 = arith.xori %21, %23 : vector<16x128xi32>
    %c-2048144789_i32 = arith.constant -2048144789 : i32
    %25 = vector.broadcast %c-2048144789_i32 : i32 to vector<16x128xi32>
    %26 = arith.addi %24, %25 : vector<16x128xi32>
    %c16_i32_2 = arith.constant 16 : i32
    %27 = vector.broadcast %c16_i32_2 : i32 to vector<16x128xi32>
    %28 = arith.shrui %26, %27 : vector<16x128xi32>
    %29 = arith.xori %26, %28 : vector<16x128xi32>
    %c2146121005_i32_3 = arith.constant 2146121005 : i32
    %30 = vector.broadcast %c2146121005_i32_3 : i32 to vector<16x128xi32>
    %31 = arith.muli %29, %30 : vector<16x128xi32>
    %c15_i32_4 = arith.constant 15 : i32
    %32 = vector.broadcast %c15_i32_4 : i32 to vector<16x128xi32>
    %33 = arith.shrui %31, %32 : vector<16x128xi32>
    %34 = arith.xori %31, %33 : vector<16x128xi32>
    %c-2073254261_i32_5 = arith.constant -2073254261 : i32
    %35 = vector.broadcast %c-2073254261_i32_5 : i32 to vector<16x128xi32>
    %36 = arith.muli %34, %35 : vector<16x128xi32>
    %c16_i32_6 = arith.constant 16 : i32
    %37 = vector.broadcast %c16_i32_6 : i32 to vector<16x128xi32>
    %38 = arith.shrui %36, %37 : vector<16x128xi32>
    %39 = arith.xori %36, %38 : vector<16x128xi32>
    %c8_i32 = arith.constant 8 : i32
    %40 = vector.broadcast %c8_i32 : i32 to vector<16x128xi32>
    %41 = arith.shrui %24, %40 : vector<16x128xi32>
    %42 = arith.sitofp %41 : vector<16x128xi32> to vector<16x128xf32>
    %cst = arith.constant 5.96046448E-8 : f32
    %43 = vector.broadcast %cst : f32 to vector<16x128xf32>
    %44 = arith.mulf %42, %43 : vector<16x128xf32>
    %c8_i32_7 = arith.constant 8 : i32
    %45 = vector.broadcast %c8_i32_7 : i32 to vector<16x128xi32>
    %46 = arith.shrui %39, %45 : vector<16x128xi32>
    %47 = arith.sitofp %46 : vector<16x128xi32> to vector<16x128xf32>
    %cst_8 = arith.constant 5.96046448E-8 : f32
    %48 = vector.broadcast %cst_8 : f32 to vector<16x128xf32>
    %49 = arith.mulf %47, %48 : vector<16x128xf32>
    %cst_9 = arith.constant 2.000000e+00 : f32
    %50 = vector.broadcast %cst_9 : f32 to vector<16x128xf32>
    %51 = arith.mulf %49, %50 : vector<16x128xf32>
    %cst_10 = arith.constant -1.000000e+00 : f32
    %52 = vector.broadcast %cst_10 : f32 to vector<16x128xf32>
    %53 = arith.addf %51, %52 : vector<16x128xf32>
    %c0_11 = arith.constant 0 : index
    %c0_12 = arith.constant 0 : index
    %54 = vector.load %arg2[%c0_11, %c0_12] : memref<16x128xf32, #tpu.memory_space<vmem>>, vector<16x128xf32>
    %cst_13 = arith.constant 3.000000e-01 : f32
    %55 = vector.broadcast %cst_13 : f32 to vector<16x128xf32>
    %56 = arith.cmpf olt, %44, %55 : vector<16x128xf32>
    %57 = arith.select %56, %53, %54 : vector<16x128xi1>, vector<16x128xf32>
    %c0_14 = arith.constant 0 : index
    %c0_15 = arith.constant 0 : index
    %58 = vector.load %arg3[%c0_14, %c0_15] : memref<16x128xf32, #tpu.memory_space<vmem>>, vector<16x128xf32>
    tpu.vector_store %arg3[%c0_14, %c0_15], %57 {strides = array<i32>} : memref<16x128xf32, #tpu.memory_space<vmem>>, vector<16x128xf32>,
    return
  }
  func.func @transform_0(%arg0: i32) -> i32 {
    %c0_i32 = arith.constant 0 : i32
    %c0_i32_0 = arith.constant 0 : i32
    return %c0_i32 : i32
  }
  func.func @transform_1(%arg0: i32) -> (i32, i32) {
    %c0_i32 = arith.constant 0 : i32
    %c0_i32_0 = arith.constant 0 : i32
    return %arg0, %c0_i32 : i32, i32
  }
  func.func @transform_2(%arg0: i32) -> (i32, i32) {
    %c0_i32 = arith.constant 0 : i32
    %c0_i32_0 = arith.constant 0 : i32
    return %arg0, %c0_i32 : i32, i32
  }
}

</mosaic_0001>

<llo_original>
// kernel: tpu_custom_call.1
$region0: #{tpu_custom_call.1}
  #allocation0 [shape = 'u32[]', space=smem, size = 0x4, offset = 0x4, fixed_abs, tag = 'smem constant byte address 0x4 - core index']
  #allocation1 [shape = 'u32[144,128]{1,0:T(1,128)}', space=vmem, size = 0x12000, scoped, tag = 'internal scratch']
  #allocation2 [shape = 's32[1]{0:T(128)S(6)}', space=smem, size = 0x200, scoped, tag = 'scoped memory for tpu_custom_call.1']
  %s0 = inlined_call_operand.<no memory space> [shape: s32[1], index: 0, kind: input, shape index: {}]
  %s1 = inlined_call_operand.hbm [shape: f32[16,128], index: 1, kind: input, shape index: {}]
  %s2 = inlined_call_operand.hbm [shape: f32[16,128], index: 2, kind: output, shape index: {}]
  %s3 = sld [smem:[#allocation0]]
  $region22: #{tpu_custom_call.1} parent=0
    _
  %s5 = ssub.s32 1, %s3
  %s6 = scalar_select 0, %s5, %s3
  %7 = sst [smem:[#allocation2]] %s0
  $region1: #{tpu_custom_call.1} parent=0
    #allocation3 [shape = 'u8[8192]{0}', space=vmem, size = 0x2000, scoped, tag = 'input window, operand 1, single buffered']
    #allocation4 [shape = 's32[1]{0}', space=sflag, size = 0x4, scoped, tag = 'scoped memory for tpu_custom_call.1']
    #allocation5 [shape = 's32[1]{0}', space=sflag, size = 0x4, scoped, tag = 'scoped memory for tpu_custom_call.1']
    #allocation6 [shape = 'u8[8192]{0}', space=vmem, size = 0x2000, scoped, tag = 'output window, operand 0, single buffered']
    %8 = vsyncpa [#allocation4], 0
    %9 = vsyncpa [#allocation5], 0
    // Predicated region
    $region2: #{tpu_custom_call.1} parent=1 // pred_check
      _
    $region3: #{tpu_custom_call.1} parent=1 // pred_check_branch
      %11 = sbr.rel (0) target = $region5
    $region4: #{tpu_custom_call.1} parent=1 // pred_region
      _
    $region5: #{tpu_custom_call.1} parent=1 // pred_fallthru
      _
    // Predicated region
    $region6: #{tpu_custom_call.1} parent=1 // pred_check
      _
    $region7: #{tpu_custom_call.1} parent=1 // pred_check_branch
      %13 = sbr.rel (0) target = $region9
    $region8: #{tpu_custom_call.1} parent=1 // pred_region
      %s15 = ssub.s32 256, 256
      %16 = vsyncadd [#allocation4], %s15
      %s17 = sshll.u32 [#allocation3], 4
      %s18 = int_to_ptr.vmem [resolvable:$true] %s17
      %23 = dma.hbm_to_vmem [thread:$0]  %s1, 256, %s18, [#allocation4], 128, 128, 8
    $region9: #{tpu_custom_call.1} parent=1 // pred_fallthru
      _
    // Predicated region
    $region10: #{tpu_custom_call.1} parent=1 // pred_check
      _
    $region11: #{tpu_custom_call.1} parent=1 // pred_check_branch
      %25 = sbr.rel (0) target = $region13
    $region12: #{tpu_custom_call.1} parent=1 // pred_region
      %26 = dma.done [#allocation4], 256
    $region13: #{tpu_custom_call.1} parent=1 // pred_fallthru
      _
    %s27 = smul.u32 0, 16
    %v28 = vlaneseq
    %v29 = vshrl.u32 %v28, 7
    %v30 = vadd.s32 %v29, 8
    %v31 = vlaneseq
    %v32 = vand.u32 %v31, 127
    %s33 = sld [smem:[#allocation2]]
    %v34 = vstv %s27
    %v35 = vadd.s32 %v34, %v29
    %v36 = vadd.s32 %v34, %v30
    %v37 = vmul.u32 %v35, 128
    %v38 = vmul.u32 %v36, 128
    %v39 = vadd.s32 %v37, %v32
    %v40 = vadd.s32 %v38, %v32
    %s41 = smul.u32 %s33, 2654435769
    %v42 = vstv %s41
    %v43 = vadd.s32 %v39, %v42
    %v44 = vadd.s32 %v40, %v42
    %v45 = vshrl.u32 %v43, 16
    %v46 = vshrl.u32 %v44, 16
    %v47 = vxor.u32 %v43, %v45
    %v48 = vxor.u32 %v44, %v46
    %v49 = vmul.u32 %v47, 2146121005
    %v50 = vmul.u32 %v48, 2146121005
    %v51 = vshrl.u32 %v49, 15
    %v52 = vshrl.u32 %v50, 15
    %v53 = vxor.u32 %v49, %v51
    %v54 = vxor.u32 %v50, %v52
    %v55 = vmul.u32 %v53, 2221713035
    %v56 = vmul.u32 %v54, 2221713035
    %v57 = vshrl.u32 %v55, 16
    %v58 = vshrl.u32 %v56, 16
    %v59 = vxor.u32 %v55, %v57
    %v60 = vxor.u32 %v56, %v58
    %v61 = vadd.s32 %v59, 2246822507
    %v62 = vadd.s32 %v60, 2246822507
    %v63 = vshrl.u32 %v61, 16
    %v64 = vshrl.u32 %v62, 16
    %v65 = vxor.u32 %v61, %v63
    %v66 = vxor.u32 %v62, %v64
    %v67 = vmul.u32 %v65, 2146121005
    %v68 = vmul.u32 %v66, 2146121005
    %v69 = vshrl.u32 %v67, 15
    %v70 = vshrl.u32 %v68, 15
    %v71 = vxor.u32 %v67, %v69
    %v72 = vxor.u32 %v68, %v70
    %v73 = vmul.u32 %v71, 2221713035
    %v74 = vmul.u32 %v72, 2221713035
    %v75 = vshrl.u32 %v73, 16
    %v76 = vshrl.u32 %v74, 16
    %v77 = vxor.u32 %v73, %v75
    %v78 = vxor.u32 %v74, %v76
    %v79 = vshrl.u32 %v59, 8
    %v80 = vshrl.u32 %v60, 8
    %v81 = vcvt.s32.f32 %v79
    %v82 = vcvt.s32.f32 %v80
    %v83 = vmul.f32 %v81, 5.9604645e-08
    %v84 = vmul.f32 %v82, 5.9604645e-08
    %v85 = vshrl.u32 %v77, 8
    %v86 = vshrl.u32 %v78, 8
    %v87 = vcvt.s32.f32 %v85
    %v88 = vcvt.s32.f32 %v86
    %v89 = vmul.f32 %v87, 5.9604645e-08
    %v90 = vmul.f32 %v88, 5.9604645e-08
    %v91 = vmul.f32 %v89, 2.0
    %v92 = vmul.f32 %v90, 2.0
    %v93 = vadd.f32 %v91, -1.0
    %v94 = vadd.f32 %v92, -1.0
    %v95 = vld [vmem:[#allocation3] sm:$0xff]
    %v96 = vld [vmem:[#allocation3 + $0x8] sm:$0xff]
    %vm97 = vcmp.lt.f32.partialorder %v83, 0.3
    %vm98 = vcmp.lt.f32.partialorder %v84, 0.3
    %v99 = vsel %vm97, %v93, %v95
    %v100 = vsel %vm98, %v94, %v96
    %101 = vst [vmem:[#allocation6] sm:$0xff] %v99
    %102 = vst [vmem:[#allocation6 + $0x8] sm:$0xff] %v100
    // Predicated region
    $region14: #{tpu_custom_call.1} parent=1 // pred_check
      _
    $region15: #{tpu_custom_call.1} parent=1 // pred_check_branch
      %104 = sbr.rel (0) target = $region17
    $region16: #{tpu_custom_call.1} parent=1 // pred_region
      %s106 = ssub.s32 256, 256
      %107 = vsyncadd [#allocation5], %s106
      %s108 = sshll.u32 [#allocation6], 4
      %s109 = int_to_ptr.vmem [resolvable:$true] %s108
      %114 = dma.vmem_to_hbm [thread:$0]  %s109, 256, %s2, [#allocation5], 128, 128, 8
    $region17: #{tpu_custom_call.1} parent=1 // pred_fallthru
      _
    // Predicated region
    $region18: #{tpu_custom_call.1} parent=1 // pred_check
      _
    $region19: #{tpu_custom_call.1} parent=1 // pred_check_branch
      %116 = sbr.rel (0) target = $region21
    $region20: #{tpu_custom_call.1} parent=1 // pred_region
      %117 = dma.done [#allocation5], 256
    $region21: #{tpu_custom_call.1} parent=1 // pred_fallthru
      _
    %118 = vsyncpa [#allocation4], 1
    %119 = vsyncpa [#allocation5], 1

</llo_original>
